<compile_context>
chip_gen: v6e
topology: v6e:2x2x1
jax: 0.10.0
libtpu: 0.0.40
codegen_flags: <defaults>
</compile_context>

<pallas_src>
import jax
import jax.numpy as jnp
from jax.experimental import pallas as pl
from jax.experimental.pallas import tpu as pltpu


def action_fusion_kernel(sug_ref, q_ref, w1a_ref, w1b_ref, b1_ref, w2row_ref, b2_ref, o_ref):
    sug = sug_ref[...].astype(jnp.float32)
    q = q_ref[...].astype(jnp.float32)

    # Hidden layer of the attention MLP: cat([sug, q]) @ W1 + b1 in split-matmul form.
    h = (
        jnp.dot(sug, w1a_ref[...], preferred_element_type=jnp.float32)
        + jnp.dot(q, w1b_ref[...], preferred_element_type=jnp.float32)
        + b1_ref[...]
    )
    h = jnp.maximum(h, 0.0)  # ReLU

    # Second linear -> per-row scalar logit.  [tb,64]x[64,1] on the MXU lights 1 of
    # 256 columns, so do it as a VPU multiply + lane (XLU) reduction instead.
    logit = jnp.sum(h * w2row_ref[...], axis=-1, keepdims=True) + b2_ref[0]
    attn = jax.nn.sigmoid(logit)  # [tb, 1], broadcasts over the feature (lane) dim

    # Blend: attn*sug + (1-attn)*q  ==  q + attn*(sug - q)
    o_ref[...] = (q + attn * (sug - q)).astype(o_ref.dtype)


def action_fusion(sug_Q, Q, w1, b1, w2, b2, *, tb=None):
    """Pallas-backed ActionFusion forward.

    sug_Q, Q: [B, D]; w1: [2D, 64]; b1: [64]; w2: [64, 1]; b2: [1]
    """
    B, D = sug_Q.shape
    H = w1.shape[1]
    itemsize = jnp.dtype(sug_Q.dtype).itemsize

    # ---- batch tile selection: big enough to reach the HBM roofline (>= ~512 rows
    # amortizes the ~0.35us/step grid overhead), small enough that the three
    # double-buffered activation tiles stay well inside scoped VMEM.
    if tb is None:
        vmem_tile_budget = 24 * 1024 * 1024                  # bytes for live data tiles
        bytes_per_row = 3 * D * itemsize * 2                 # 3 tiles, double-buffered
        max_rows = max(8, vmem_tile_budget // max(bytes_per_row, 1))
        tb = min(1024, int(max_rows))
    tb = max(8, (int(tb) // 8) * 8)                          # (8,128) sublane constraint
    padded_B = ((B + 7) // 8) * 8
    tb = min(tb, padded_B)

    # ---- pad a ragged batch up to a multiple of tb (only when needed; pad rows are
    # benign and sliced off at the end).
    Bp = ((B + tb - 1) // tb) * tb
    if Bp != B:
        pad = Bp - B
        sug_p = jnp.pad(sug_Q, ((0, pad), (0, 0)))
        q_p = jnp.pad(Q, ((0, pad), (0, 0)))
    else:
        sug_p, q_p = sug_Q, Q

    # Split W1 so the concat becomes two matmuls (wrapper-side layout plumbing only).
    w1a = w1[:D, :].astype(jnp.float32)
    w1b = w1[D:, :].astype(jnp.float32)
    b1_2d = b1.reshape(1, H).astype(jnp.float32)
    w2_row = w2.reshape(1, H).astype(jnp.float32)            # [64,1] -> [1,64] VPU row
    b2_1d = b2.reshape(1).astype(jnp.float32)                 # SMEM scalar

    grid = (Bp // tb,)

    # Explicit scoped-VMEM budget (double-buffered activation tiles + resident weights),
    # with headroom, capped below the v7x 64 MiB physical VMEM.
    tile_bytes = tb * D * itemsize
    weight_bytes = (2 * D * H + 2 * H) * 4
    vmem_needed = 3 * 2 * tile_bytes + weight_bytes
    vmem_limit = int(min(max(2 * vmem_needed, 32 * 1024 * 1024), 48 * 1024 * 1024))

    cost = pl.CostEstimate(
        flops=int(Bp * (2 * (2 * D) * H + 4 * H + 4 * D)),
        transcendentals=int(Bp),
        bytes_accessed=int(3 * Bp * D * itemsize + weight_bytes),
    )

    out = pl.pallas_call(
        action_fusion_kernel,
        out_shape=jax.ShapeDtypeStruct((Bp, D), sug_Q.dtype),
        grid_spec=pltpu.PrefetchScalarGridSpec(
            num_scalar_prefetch=0,
            grid=grid,
            in_specs=[
                pl.BlockSpec((tb, D), lambda i: (i, 0)),   # sug_Q batch tile
                pl.BlockSpec((tb, D), lambda i: (i, 0)),   # Q batch tile
                pl.BlockSpec((D, H), lambda i: (0, 0)),    # W1a (VMEM-resident)
                pl.BlockSpec((D, H), lambda i: (0, 0)),    # W1b (VMEM-resident)
                pl.BlockSpec((1, H), lambda i: (0, 0)),    # b1
                pl.BlockSpec((1, H), lambda i: (0, 0)),    # W2 as a row
                pl.BlockSpec(memory_space=pltpu.MemorySpace.SMEM),  # b2 scalar
            ],
            out_specs=pl.BlockSpec((tb, D), lambda i: (i, 0)),
        ),
        compiler_params=pltpu.CompilerParams(
            dimension_semantics=("parallel",),
            vmem_limit_bytes=vmem_limit,
        ),
        cost_estimate=cost,
    )(sug_p, q_p, w1a, w1b, b1_2d, w2_row, b2_1d)

    return out[:B] if Bp != B else out


def reference(sug_Q, Q, w1, b1, w2, b2):
    combined = jnp.concatenate([sug_Q, Q], axis=-1)
    h = jnp.maximum(combined @ w1 + b1, 0.0)
    attn = jax.nn.sigmoid(h @ w2 + b2)  # [B, 1]
    return attn * sug_Q + (1.0 - attn) * Q


if __name__ == "__main__":
    key = jax.random.PRNGKey(0)
    B, D, HID = 8, 32, 64  # input_dim = D

    k_sug, k_q, k_w1, k_b1, k_w2, k_b2 = jax.random.split(key, 6)
    sug_Q = jax.random.normal(k_sug, (B, D), dtype=jnp.float32)
    Q = jax.random.normal(k_q, (B, D), dtype=jnp.float32)

    # Deterministic parameter init (PyTorch-style uniform +/- 1/sqrt(fan_in)).
    bound1 = 1.0 / jnp.sqrt(2.0 * D)
    w1 = jax.random.uniform(k_w1, (2 * D, HID), jnp.float32, -bound1, bound1)
    b1 = jax.random.uniform(k_b1, (HID,), jnp.float32, -bound1, bound1)
    bound2 = 1.0 / jnp.sqrt(float(HID))
    w2 = jax.random.uniform(k_w2, (HID, 1), jnp.float32, -bound2, bound2)
    b2 = jax.random.uniform(k_b2, (1,), jnp.float32, -bound2, bound2)

    out = action_fusion(sug_Q, Q, w1, b1, w2, b2)
    out = jax.block_until_ready(out)

    ref = reference(sug_Q, Q, w1, b1, w2, b2)
    assert out.shape == (B, D)
    assert jnp.allclose(out, ref, atol=1e-5, rtol=1e-5), "mismatch vs reference"

    print("KERNEL_OK")
</pallas_src>

<mosaic_0001>
module attributes {stable_mosaic.version = 11 : i64} {
  func.func @action_fusion_kernel(%arg0: i32, %arg1: memref<8x32xf32, #tpu.memory_space<vmem>>, %arg2: memref<8x32xf32, #tpu.memory_space<vmem>>, %arg3: memref<32x64xf32, #tpu.memory_space<vmem>>, %arg4: memref<32x64xf32, #tpu.memory_space<vmem>>, %arg5: memref<1x64xf32, #tpu.memory_space<vmem>>, %arg6: memref<1x64xf32, #tpu.memory_space<vmem>>, %arg7: memref<1xf32, #tpu.memory_space<smem>>, %arg8: memref<8x32xf32, #tpu.memory_space<vmem>>) attributes {dimension_semantics = [#tpu.dimension_semantics<parallel>], iteration_bounds = array<i64: 1>, scalar_prefetch = 0 : i64, scratch_operands = 0 : i64, tpu.core_type = #tpu.core_type<tc>, window_params = [{transform_indices = @transform_0, window_bounds = array<i64: 8, 32>}, {transform_indices = @transform_1, window_bounds = array<i64: 8, 32>}, {pipeline_mode = #tpu.pipeline_mode<synchronous>, transform_indices = @transform_2, window_bounds = array<i64: 32, 64>}, {pipeline_mode = #tpu.pipeline_mode<synchronous>, transform_indices = @transform_3, window_bounds = array<i64: 32, 64>}, {pipeline_mode = #tpu.pipeline_mode<synchronous>, transform_indices = @transform_4, window_bounds = array<i64: 1, 64>}, {pipeline_mode = #tpu.pipeline_mode<synchronous>, transform_indices = @transform_5, window_bounds = array<i64: 1, 64>}, {transform_indices = @transform_6, window_bounds = array<i64: 1>}, {transform_indices = @transform_7, window_bounds = array<i64: 8, 32>}]} {
    %c0 = arith.constant 0 : index
    %c0_0 = arith.constant 0 : index
    %0 = vector.load %arg1[%c0, %c0_0] : memref<8x32xf32, #tpu.memory_space<vmem>>, vector<8x32xf32>
    %c0_1 = arith.constant 0 : index
    %c0_2 = arith.constant 0 : index
    %1 = vector.load %arg2[%c0_1, %c0_2] : memref<8x32xf32, #tpu.memory_space<vmem>>, vector<8x32xf32>
    %c0_3 = arith.constant 0 : index
    %c0_4 = arith.constant 0 : index
    %2 = vector.load %arg3[%c0_3, %c0_4] : memref<32x64xf32, #tpu.memory_space<vmem>>, vector<32x64xf32>
    %cst = arith.constant dense<0.000000e+00> : vector<8x64xf32>
    %3 = tpu.matmul %0, %2, %cst {dimension_numbers = #tpu.dot_dimension_numbers<[1], [0], [0], [1], [0, 0, 1, 1], [], []>} : vector<8x32xf32>, vector<32x64xf32>, vector<8x64xf32> -> vector<8x64xf32>
    %c0_5 = arith.constant 0 : index
    %c0_6 = arith.constant 0 : index
    %4 = vector.load %arg4[%c0_5, %c0_6] : memref<32x64xf32, #tpu.memory_space<vmem>>, vector<32x64xf32>
    %cst_7 = arith.constant dense<0.000000e+00> : vector<8x64xf32>
    %5 = tpu.matmul %1, %4, %cst_7 {dimension_numbers = #tpu.dot_dimension_numbers<[1], [0], [0], [1], [0, 0, 1, 1], [], []>} : vector<8x32xf32>, vector<32x64xf32>, vector<8x64xf32> -> vector<8x64xf32>
    %6 = arith.addf %3, %5 : vector<8x64xf32>
    %c0_8 = arith.constant 0 : index
    %c0_9 = arith.constant 0 : index
    %7 = vector.load %arg5[%c0_8, %c0_9] : memref<1x64xf32, #tpu.memory_space<vmem>>, vector<1x64xf32>
    %8 = vector.broadcast %7 : vector<1x64xf32> to vector<8x64xf32>
    %9 = arith.addf %6, %8 : vector<8x64xf32>
    %cst_10 = arith.constant 0.000000e+00 : f32
    %10 = vector.broadcast %cst_10 : f32 to vector<8x64xf32>
    %11 = arith.maximumf %9, %10 : vector<8x64xf32>
    %c0_11 = arith.constant 0 : index
    %c0_12 = arith.constant 0 : index
    %12 = vector.load %arg6[%c0_11, %c0_12] : memref<1x64xf32, #tpu.memory_space<vmem>>, vector<1x64xf32>
    %13 = vector.broadcast %12 : vector<1x64xf32> to vector<8x64xf32>
    %14 = arith.mulf %11, %13 : vector<8x64xf32>
    %cst_13 = arith.constant dense<0.000000e+00> : vector<8xf32>
    %15 = vector.multi_reduction <add>, %14, %cst_13 [1] : vector<8x64xf32> to vector<8xf32>
    %16 = vector.shape_cast %15 : vector<8xf32> to vector<8x1xf32>
    %c0_14 = arith.constant 0 : index
    %17 = memref.load %arg7[%c0_14] : memref<1xf32, #tpu.memory_space<smem>>
    %18 = vector.broadcast %17 : f32 to vector<8x1xf32>
    %19 = arith.addf %16, %18 : vector<8x1xf32>
    %20 = arith.negf %19 : vector<8x1xf32>
    %21 = math.exp %20 : vector<8x1xf32>
    %cst_15 = arith.constant 1.000000e+00 : f32
    %22 = vector.broadcast %cst_15 : f32 to vector<8x1xf32>
    %23 = arith.addf %22, %21 : vector<8x1xf32>
    %24 = arith.divf %22, %23 : vector<8x1xf32>
    %25 = arith.subf %0, %1 : vector<8x32xf32>
    %26 = vector.broadcast %24 : vector<8x1xf32> to vector<8x32xf32>
    %27 = arith.mulf %26, %25 : vector<8x32xf32>
    %28 = arith.addf %1, %27 : vector<8x32xf32>
    %c0_16 = arith.constant 0 : index
    %c0_17 = arith.constant 0 : index
    %29 = vector.load %arg8[%c0_16, %c0_17] : memref<8x32xf32, #tpu.memory_space<vmem>>, vector<8x32xf32>
    tpu.vector_store %arg8[%c0_16, %c0_17], %28 {strides = array<i32>} : memref<8x32xf32, #tpu.memory_space<vmem>>, vector<8x32xf32>,
    return
  }
  func.func @transform_0(%arg0: i32) -> (i32, i32) {
    %c0_i32 = arith.constant 0 : i32
    %c0_i32_0 = arith.constant 0 : i32
    return %arg0, %c0_i32 : i32, i32
  }
  func.func @transform_1(%arg0: i32) -> (i32, i32) {
    %c0_i32 = arith.constant 0 : i32
    %c0_i32_0 = arith.constant 0 : i32
    return %arg0, %c0_i32 : i32, i32
  }
  func.func @transform_2(%arg0: i32) -> (i32, i32) {
    %c0_i32 = arith.constant 0 : i32
    %c0_i32_0 = arith.constant 0 : i32
    %c0_i32_1 = arith.constant 0 : i32
    return %c0_i32, %c0_i32_0 : i32, i32
  }
  func.func @transform_3(%arg0: i32) -> (i32, i32) {
    %c0_i32 = arith.constant 0 : i32
    %c0_i32_0 = arith.constant 0 : i32
    %c0_i32_1 = arith.constant 0 : i32
    return %c0_i32, %c0_i32_0 : i32, i32
  }
  func.func @transform_4(%arg0: i32) -> (i32, i32) {
    %c0_i32 = arith.constant 0 : i32
    %c0_i32_0 = arith.constant 0 : i32
    %c0_i32_1 = arith.constant 0 : i32
    return %c0_i32, %c0_i32_0 : i32, i32
  }
  func.func @transform_5(%arg0: i32) -> (i32, i32) {
    %c0_i32 = arith.constant 0 : i32
    %c0_i32_0 = arith.constant 0 : i32
    %c0_i32_1 = arith.constant 0 : i32
    return %c0_i32, %c0_i32_0 : i32, i32
  }
  func.func @transform_6(%arg0: i32) -> i32 {
    %c0_i32 = arith.constant 0 : i32
    %c0_i32_0 = arith.constant 0 : i32
    return %c0_i32 : i32
  }
  func.func @transform_7(%arg0: i32) -> (i32, i32) {
    %c0_i32 = arith.constant 0 : i32
    %c0_i32_0 = arith.constant 0 : i32
    return %arg0, %c0_i32 : i32, i32
  }
}

</mosaic_0001>

<llo_original>
// kernel: tpu_custom_call.1
$region0: #{tpu_custom_call.1}
  #allocation0 [shape = 'u32[]', space=smem, size = 0x4, offset = 0x4, fixed_abs, tag = 'smem constant byte address 0x4 - core index']
  #allocation1 [shape = 'u32[144,128]{1,0:T(1,128)}', space=vmem, size = 0x12000, scoped, tag = 'internal scratch']
  #allocation2 [shape = 'f32[1]{0:T(128)S(6)}', space=smem, size = 0x200, scoped, tag = 'scoped memory for tpu_custom_call.1']
  %s0 = inlined_call_operand.hbm [shape: f32[8,32], index: 0, kind: input, shape index: {}]
  %s1 = inlined_call_operand.hbm [shape: f32[8,32], index: 1, kind: input, shape index: {}]
  %s2 = inlined_call_operand.hbm [shape: f32[32,64], index: 2, kind: input, shape index: {}]
  %s3 = inlined_call_operand.hbm [shape: f32[32,64], index: 3, kind: input, shape index: {}]
  %s4 = inlined_call_operand.vmem [shape: f32[1,64], index: 4, kind: input, shape index: {}]
  %s5 = inlined_call_operand.vmem [shape: f32[1,64], index: 5, kind: input, shape index: {}]
  %s6 = inlined_call_operand.<no memory space> [shape: f32[1], index: 6, kind: input, shape index: {}]
  %s7 = inlined_call_operand.hbm [shape: f32[8,32], index: 7, kind: output, shape index: {}]
  %s8 = sld [smem:[#allocation0]]
  $region54: #{tpu_custom_call.1} parent=0
    _
  %s10 = ssub.s32 1, %s8
  %s11 = scalar_select 0, %s10, %s8
  %12 = sst [smem:[#allocation2]] %s6
  $region1: #{tpu_custom_call.1} parent=0
    #allocation3 [shape = 'u8[4096]{0}', space=vmem, size = 0x1000, scoped, tag = 'input window, operand 0, single buffered']
    #allocation4 [shape = 's32[1]{0}', space=sflag, size = 0x4, scoped, tag = 'scoped memory for tpu_custom_call.1']
    #allocation5 [shape = 's32[1]{0}', space=sflag, size = 0x4, scoped, tag = 'scoped memory for tpu_custom_call.1']
    #allocation6 [shape = 'u8[4096]{0}', space=vmem, size = 0x1000, scoped, tag = 'input window, operand 1, single buffered']
    #allocation7 [shape = 's32[1]{0}', space=sflag, size = 0x4, scoped, tag = 'scoped memory for tpu_custom_call.1']
    #allocation8 [shape = 'u8[16384]{0}', space=vmem, size = 0x4000, scoped, tag = 'input window, operand 2, single buffered']
    #allocation9 [shape = 'u8[16384]{0}', space=vmem, size = 0x4000, scoped, tag = 'input window, operand 3, single buffered']
    #allocation10 [shape = 's32[1]{0}', space=sflag, size = 0x4, scoped, tag = 'scoped memory for tpu_custom_call.1']
    #allocation11 [shape = 'u8[4096]{0}', space=vmem, size = 0x1000, scoped, tag = 'output window, operand 0, single buffered']
    %13 = vsyncpa [#allocation4], 0
    %14 = vsyncpa [#allocation7], 0
    %15 = vsyncpa [#allocation10], 0
    %16 = vsyncpa [#allocation5], 0
    // Predicated region
    $region2: #{tpu_custom_call.1} parent=1 // pred_check
      _
    $region3: #{tpu_custom_call.1} parent=1 // pred_check_branch
      %18 = sbr.rel (0) target = $region5
    $region4: #{tpu_custom_call.1} parent=1 // pred_region
      %s20 = ssub.s32 128, 128
      %21 = vsyncadd [#allocation4], %s20
      %s23 = sshll.u32 [#allocation3], 4
      %s24 = int_to_ptr.vmem [resolvable:$true] %s23
      %26 = dma.hbm_to_vmem [thread:$0]  %s0, 128, %s24, [#allocation4]
    $region5: #{tpu_custom_call.1} parent=1 // pred_fallthru
      _
    // Predicated region
    $region6: #{tpu_custom_call.1} parent=1 // pred_check
      _
    $region7: #{tpu_custom_call.1} parent=1 // pred_check_branch
      %28 = sbr.rel (0) target = $region9
    $region8: #{tpu_custom_call.1} parent=1 // pred_region
      %s30 = ssub.s32 128, 128
      %31 = vsyncadd [#allocation7], %s30
      %s33 = sshll.u32 [#allocation6], 4
      %s34 = int_to_ptr.vmem [resolvable:$true] %s33
      %36 = dma.hbm_to_vmem [thread:$0]  %s1, 128, %s34, [#allocation7]
    $region9: #{tpu_custom_call.1} parent=1 // pred_fallthru
      _
    // Predicated region
    $region10: #{tpu_custom_call.1} parent=1 // pred_check
      _
    $region11: #{tpu_custom_call.1} parent=1 // pred_check_branch
      %38 = sbr.rel (0) target = $region13
    $region12: #{tpu_custom_call.1} parent=1 // pred_region
      %s40 = ssub.s32 512, 512
      %41 = vsyncadd [#allocation7], %s40
      %s42 = sshll.u32 [#allocation8], 4
      %s43 = int_to_ptr.vmem [resolvable:$true] %s42
      %48 = dma.hbm_to_vmem [thread:$0]  %s2, 512, %s43, [#allocation7], 128, 128, 8
    $region13: #{tpu_custom_call.1} parent=1 // pred_fallthru
      _
    // Predicated region
    $region14: #{tpu_custom_call.1} parent=1 // pred_check
      _
    $region15: #{tpu_custom_call.1} parent=1 // pred_check_branch
      %50 = sbr.rel (0) target = $region17
    $region16: #{tpu_custom_call.1} parent=1 // pred_region
      %s52 = ssub.s32 512, 512
      %53 = vsyncadd [#allocation10], %s52
      %s54 = sshll.u32 [#allocation9], 4
      %s55 = int_to_ptr.vmem [resolvable:$true] %s54
      %60 = dma.hbm_to_vmem [thread:$0]  %s3, 512, %s55, [#allocation10], 128, 128, 8
    $region17: #{tpu_custom_call.1} parent=1 // pred_fallthru
      _
    // Predicated region
    $region18: #{tpu_custom_call.1} parent=1 // pred_check
      _
    $region19: #{tpu_custom_call.1} parent=1 // pred_check_branch
      %62 = sbr.rel (0) target = $region21
    $region20: #{tpu_custom_call.1} parent=1 // pred_region
      _
    $region21: #{tpu_custom_call.1} parent=1 // pred_fallthru
      _
    // Predicated region
    $region22: #{tpu_custom_call.1} parent=1 // pred_check
      _
    $region23: #{tpu_custom_call.1} parent=1 // pred_check_branch
      %64 = sbr.rel (0) target = $region25
    $region24: #{tpu_custom_call.1} parent=1 // pred_region
      _
    $region25: #{tpu_custom_call.1} parent=1 // pred_fallthru
      _
    // Predicated region
    $region26: #{tpu_custom_call.1} parent=1 // pred_check
      _
    $region27: #{tpu_custom_call.1} parent=1 // pred_check_branch
      %66 = sbr.rel (0) target = $region29
    $region28: #{tpu_custom_call.1} parent=1 // pred_region
      _
    $region29: #{tpu_custom_call.1} parent=1 // pred_fallthru
      _
    // Predicated region
    $region30: #{tpu_custom_call.1} parent=1 // pred_check
      _
    $region31: #{tpu_custom_call.1} parent=1 // pred_check_branch
      %68 = sbr.rel (0) target = $region33
    $region32: #{tpu_custom_call.1} parent=1 // pred_region
      %69 = dma.done [#allocation4], 128
    $region33: #{tpu_custom_call.1} parent=1 // pred_fallthru
      _
    // Predicated region
    $region34: #{tpu_custom_call.1} parent=1 // pred_check
      _
    $region35: #{tpu_custom_call.1} parent=1 // pred_check_branch
      %71 = sbr.rel (0) target = $region37
    $region36: #{tpu_custom_call.1} parent=1 // pred_region
      %72 = dma.done [#allocation7], 128
    $region37: #{tpu_custom_call.1} parent=1 // pred_fallthru
      _
    // Predicated region
    $region38: #{tpu_custom_call.1} parent=1 // pred_check
      _
    $region39: #{tpu_custom_call.1} parent=1 // pred_check_branch
      %74 = sbr.rel (0) target = $region41
    $region40: #{tpu_custom_call.1} parent=1 // pred_region
      %75 = dma.done [#allocation7], 512
    $region41: #{tpu_custom_call.1} parent=1 // pred_fallthru
      _
    // Predicated region
    $region42: #{tpu_custom_call.1} parent=1 // pred_check
      _
    $region43: #{tpu_custom_call.1} parent=1 // pred_check_branch
      %77 = sbr.rel (0) target = $region45
    $region44: #{tpu_custom_call.1} parent=1 // pred_region
      %78 = dma.done [#allocation10], 512
    $region45: #{tpu_custom_call.1} parent=1 // pred_fallthru
      _
    %v79 = vld [vmem:[#allocation3] sm:$0xff]
    %v80 = vld [vmem:[#allocation6] sm:$0xff]
    %v81 = vld [vmem:[#allocation8] sm:$0xff]
    %v82 = vld [vmem:[#allocation8 + $0x8] sm:$0xff]
    %v83 = vld [vmem:[#allocation8 + $0x10] sm:$0xff]
    %v84 = vld [vmem:[#allocation8 + $0x18] sm:$0xff]
    %v85 = vld [vmem:[#allocation9] sm:$0xff]
    %v86 = vld [vmem:[#allocation9 + $0x8] sm:$0xff]
    %v87 = vld [vmem:[#allocation9 + $0x10] sm:$0xff]
    %v88 = vld [vmem:[#allocation9 + $0x18] sm:$0xff]
    %vm89 = vcmask 261120
    %v91 = vsel %vm89, %v80, 0
    %93 = vmatprep.subr.mxu0 0.0
    %94 = vmatpush1.msra.mxu0 0.0
    %95 = vmatprep.subr.mxu0 0.0
    %96 = vmatpush1.msra.mxu0 0.0
    %97 = vmatprep.subr.mxu0 0.0
    %98 = vmatpush1.msra.mxu0 0.0
    %99 = vmatprep.subr.mxu0 0.0
    %100 = vmatpush1.msra.mxu0 0.0
    %101 = vmatprep.subr.mxu0 0.0
    %102 = vmatpush1.msra.mxu0 0.0
    %103 = vmatprep.subr.mxu0 0.0
    %104 = vmatpush1.msra.mxu0 0.0
    %105 = vmatprep.subr.mxu0 0.0
    %106 = vmatpush1.msra.mxu0 0.0
    %107 = vmatprep.subr.mxu0 0.0
    %108 = vmatpush1.msra.mxu0 0.0
    %109 = vmatprep.subr.mxu0 0.0
    %110 = vmatpush1.msra.mxu0 0.0
    %111 = vmatprep.subr.mxu0 0.0
    %112 = vmatpush1.msra.mxu0 0.0
    %113 = vmatprep.subr.mxu0 0.0
    %114 = vmatpush1.msra.mxu0 0.0
    %115 = vmatprep.subr.mxu0 0.0
    %116 = vmatpush1.msra.mxu0 0.0
    %117 = vmatprep.subr.mxu0 0.0
    %118 = vmatpush1.msra.mxu0 %v88
    %119 = vmatprep.subr.mxu0 0.0
    %120 = vmatpush1.msra.mxu0 %v87
    %121 = vmatprep.subr.mxu0 0.0
    %122 = vmatpush1.msra.mxu0 %v86
    %123 = vmatprep.subr.mxu0 0.0
    %124 = vmatpush1.msra.mxu0 %v85
    %125 = vmatprep.subr.mxu0 0.0
    %126 = vmatpush2.msra.mxu0 0.0
    %127 = vmatprep.subr.mxu0 0.0
    %128 = vmatpush2.msra.mxu0 0.0
    %129 = vmatprep.subr.mxu0 0.0
    %130 = vmatpush2.msra.mxu0 0.0
    %131 = vmatprep.subr.mxu0 0.0
    %132 = vmatpush2.msra.mxu0 0.0
    %133 = vmatprep.subr.mxu0 0.0
    %134 = vmatpush2.msra.mxu0 0.0
    %135 = vmatprep.subr.mxu0 0.0
    %136 = vmatpush2.msra.mxu0 0.0
    %137 = vmatprep.subr.mxu0 0.0
    %138 = vmatpush2.msra.mxu0 0.0
    %139 = vmatprep.subr.mxu0 0.0
    %140 = vmatpush2.msra.mxu0 0.0
    %141 = vmatprep.subr.mxu0 0.0
    %142 = vmatpush2.msra.mxu0 0.0
    %143 = vmatprep.subr.mxu0 0.0
    %144 = vmatpush2.msra.mxu0 0.0
    %145 = vmatprep.subr.mxu0 0.0
    %146 = vmatpush2.msra.mxu0 0.0
    %147 = vmatprep.subr.mxu0 0.0
    %148 = vmatpush2.msra.mxu0 0.0
    %149 = vmatprep.subr.mxu0 0.0
    %150 = vmatpush2.msra.mxu0 0.0
    %151 = vmatprep.subr.mxu0 0.0
    %152 = vmatpush2.msra.mxu0 0.0
    %153 = vmatprep.subr.mxu0 0.0
    %154 = vmatpush2.msra.mxu0 0.0
    %155 = vmatprep.subr.mxu0 0.0
    %156 = vmatpush2.msra.mxu0 0.0
    %157 = vmatprep.mubr.f32.mxu0 0.0
    %158 = vmatmul.mubr.f32.gmra.mxu0 %v91
    %v159 = vpop.f32.mrf.mxu0
    %v160 = vadd.f32 0.0, %v159
    %v161 = vpop.f32.mrf.mxu0
    %162 = vdwg.mxu0
    %v164 = vsel %vm89, %v79, 0
    %166 = vmatprep.subr.mxu0 0.0
    %167 = vmatpush1.msra.mxu0 0.0
    %168 = vmatprep.subr.mxu0 0.0
    %169 = vmatpush1.msra.mxu0 0.0
    %170 = vmatprep.subr.mxu0 0.0
    %171 = vmatpush1.msra.mxu0 0.0
    %172 = vmatprep.subr.mxu0 0.0
    %173 = vmatpush1.msra.mxu0 0.0
    %174 = vmatprep.subr.mxu0 0.0
    %175 = vmatpush1.msra.mxu0 0.0
    %176 = vmatprep.subr.mxu0 0.0
    %177 = vmatpush1.msra.mxu0 0.0
    %178 = vmatprep.subr.mxu0 0.0
    %179 = vmatpush1.msra.mxu0 0.0
    %180 = vmatprep.subr.mxu0 0.0
    %181 = vmatpush1.msra.mxu0 0.0
    %182 = vmatprep.subr.mxu0 0.0
    %183 = vmatpush1.msra.mxu0 0.0
    %184 = vmatprep.subr.mxu0 0.0
    %185 = vmatpush1.msra.mxu0 0.0
    %186 = vmatprep.subr.mxu0 0.0
    %187 = vmatpush1.msra.mxu0 0.0
    %188 = vmatprep.subr.mxu0 0.0
    %189 = vmatpush1.msra.mxu0 0.0
    %190 = vmatprep.subr.mxu0 0.0
    %191 = vmatpush1.msra.mxu0 %v84
    %192 = vmatprep.subr.mxu0 0.0
    %193 = vmatpush1.msra.mxu0 %v83
    %194 = vmatprep.subr.mxu0 0.0
    %195 = vmatpush1.msra.mxu0 %v82
    %196 = vmatprep.subr.mxu0 0.0
    %197 = vmatpush1.msra.mxu0 %v81
    %198 = vmatprep.subr.mxu0 0.0
    %199 = vmatpush2.msra.mxu0 0.0
    %200 = vmatprep.subr.mxu0 0.0
    %201 = vmatpush2.msra.mxu0 0.0
    %202 = vmatprep.subr.mxu0 0.0
    %203 = vmatpush2.msra.mxu0 0.0
    %204 = vmatprep.subr.mxu0 0.0
    %205 = vmatpush2.msra.mxu0 0.0
    %206 = vmatprep.subr.mxu0 0.0
    %207 = vmatpush2.msra.mxu0 0.0
    %208 = vmatprep.subr.mxu0 0.0
    %209 = vmatpush2.msra.mxu0 0.0
    %210 = vmatprep.subr.mxu0 0.0
    %211 = vmatpush2.msra.mxu0 0.0
    %212 = vmatprep.subr.mxu0 0.0
    %213 = vmatpush2.msra.mxu0 0.0
    %214 = vmatprep.subr.mxu0 0.0
    %215 = vmatpush2.msra.mxu0 0.0
    %216 = vmatprep.subr.mxu0 0.0
    %217 = vmatpush2.msra.mxu0 0.0
    %218 = vmatprep.subr.mxu0 0.0
    %219 = vmatpush2.msra.mxu0 0.0
    %220 = vmatprep.subr.mxu0 0.0
    %221 = vmatpush2.msra.mxu0 0.0
    %222 = vmatprep.subr.mxu0 0.0
    %223 = vmatpush2.msra.mxu0 0.0
    %224 = vmatprep.subr.mxu0 0.0
    %225 = vmatpush2.msra.mxu0 0.0
    %226 = vmatprep.subr.mxu0 0.0
    %227 = vmatpush2.msra.mxu0 0.0
    %228 = vmatprep.subr.mxu0 0.0
    %229 = vmatpush2.msra.mxu0 0.0
    %230 = vmatprep.mubr.f32.mxu0 0.0
    %231 = vmatmul.mubr.f32.gmra.mxu0 %v164
    %v232 = vpop.f32.mrf.mxu0
    %v233 = vadd.f32 %v160, %v232
    %v234 = vpop.f32.mrf.mxu0
    %235 = vdwg.mxu0
    %v236 = vld [vmem:[%s4] sm:$0x1]
    %v238 = vlaneseq
    %v239 = vshrl.u32 %v238, 7
    %v240 = vsub.s32 0, %v239
    %v241 = vrot.slane %v236, %v240
    %v243 = vadd.f32 %v233, %v241
    %v244 = vmax.f32 %v243, 0.0
    %v245 = vld [vmem:[%s5] sm:$0x1]
    %v247 = vlaneseq
    %v248 = vshrl.u32 %v247, 7
    %v249 = vsub.s32 0, %v248
    %v250 = vrot.slane %v245, %v249
    %v252 = vmul.f32 %v244, %v250
    %vm253 = vcmask 523264
    %v254 = vsel %vm253, %v252, 0.0
    %255 = vadd.xlane.f32.xlu0 %v254
    %v256 = vpop.xlane.xlu0 %255
    %s257 = sld [smem:[#allocation2]]
    %v258 = vstv %s257
    %v259 = vadd.f32 %v256, %v258
    %v260 = vxor.u32 %v259, 2147483648
    %v261 = vmul.f32 %v260, 1.442695
    %v262 = vpow.pop %v261
    %v263 = vadd.f32 %v262, 1.0
    %v264 = vrcp.pop %v263
    %v265 = vmul.f32 1.0, %v264
    %v266 = vsub.f32 %v79, %v80
    %v267 = vmul.f32 %v265, %v266
    %v268 = vadd.f32 %v80, %v267
    %269 = vst.msk [vmem:[#allocation11] sm:$0xff] %vm89, %v268
    // Predicated region
    $region46: #{tpu_custom_call.1} parent=1 // pred_check
      _
    $region47: #{tpu_custom_call.1} parent=1 // pred_check_branch
      %271 = sbr.rel (0) target = $region49
    $region48: #{tpu_custom_call.1} parent=1 // pred_region
      %s273 = ssub.s32 128, 128
      %274 = vsyncadd [#allocation5], %s273
      %s276 = sshll.u32 [#allocation11], 4
      %s277 = int_to_ptr.vmem [resolvable:$true] %s276
      %279 = dma.vmem_to_hbm [thread:$0]  %s277, 128, %s7, [#allocation5]
    $region49: #{tpu_custom_call.1} parent=1 // pred_fallthru
      _
    // Predicated region
    $region50: #{tpu_custom_call.1} parent=1 // pred_check
      _
    $region51: #{tpu_custom_call.1} parent=1 // pred_check_branch
      %281 = sbr.rel (0) target = $region53
    $region52: #{tpu_custom_call.1} parent=1 // pred_region
      %282 = dma.done [#allocation5], 128
    $region53: #{tpu_custom_call.1} parent=1 // pred_fallthru
      _
    %283 = vsyncpa [#allocation4], 1
    %284 = vsyncpa [#allocation7], 1
    %285 = vsyncpa [#allocation10], 1
    %286 = vsyncpa [#allocation5], 1

</llo_original>
